<compile_context>
chip_gen: v7x
topology: tpu7x:2x2x1
jax: 0.10.0
libtpu: 0.0.40
codegen_flags: <defaults>
</compile_context>

<pallas_src>
import functools

import jax
import jax.numpy as jnp
import numpy as np
from jax import lax
from jax.experimental import pallas as pl
from jax.experimental.pallas import tpu as pltpu


def _round_up(a, b):
    return (a + b - 1) // b * b


# ---------------------------------------------------------------------------
# Kernel A (fused path): grid = (n_k,). K-tiled matmul accumulating directly
# into the VMEM-resident f32 output block; last-K epilogue computes BN batch
# stats, folds gamma/beta, applies LeakyReLU and leaves the final result in
# the output block -> a single HBM write of the conv output.
# ---------------------------------------------------------------------------
def _conv_bn_lrelu_fused_kernel(p_ref, w_ref, g_ref, b_ref, o_ref, *,
                                w_resident, tk, m_real, eps, slope):
    k = pl.program_id(0)

    @pl.when(k == 0)
    def _():
        o_ref[...] = jnp.zeros_like(o_ref)

    if w_resident:
        w_blk = w_ref[pl.ds(pl.multiple_of(k * tk, tk), tk), :]
    else:
        w_blk = w_ref[...]
    o_ref[...] += jnp.dot(p_ref[...], w_blk, preferred_element_type=jnp.float32)

    @pl.when(k == pl.num_programs(0) - 1)
    def _():
        y = o_ref[...]                                    # (Mp, Cp) f32, VMEM resident
        inv_m = 1.0 / float(m_real)
        mean = jnp.sum(y, axis=0, keepdims=True) * inv_m  # zero-padded rows add 0
        # centered variance (no E[y^2]-mean^2 cancellation); mask padded rows
        row = lax.broadcasted_iota(jnp.int32, y.shape, 0)
        diff = jnp.where(row < m_real, y - mean, 0.0)
        var = jnp.sum(diff * diff, axis=0, keepdims=True) * inv_m
        scale = g_ref[...] * lax.rsqrt(var + eps)          # gamma padded with 0 -> pad lanes stay 0
        shift = b_ref[...] - mean * scale
        z = y * scale + shift
        o_ref[...] = jnp.where(z >= 0, z, slope * z)


# ---------------------------------------------------------------------------
# Kernel B1 (two-pass path): grid = (n_m, n_k). K-tiled matmul with an f32 VMEM
# accumulator; last-K step writes the conv tile as bf16 plus per-tile BN
# partial statistics (taken from the f32 accumulator, so the bf16 cast does
# not touch the statistics).
# ---------------------------------------------------------------------------
def _conv_stats_kernel(p_ref, w_ref, y_ref, sum_ref, sq_ref, acc_ref, *,
                       w_resident, tk):
    k = pl.program_id(1)

    @pl.when(k == 0)
    def _():
        acc_ref[...] = jnp.zeros_like(acc_ref)

    if w_resident:
        w_blk = w_ref[pl.ds(pl.multiple_of(k * tk, tk), tk), :]
    else:
        w_blk = w_ref[...]
    acc_ref[...] += jnp.dot(p_ref[...], w_blk, preferred_element_type=jnp.float32)

    @pl.when(k == pl.num_programs(1) - 1)
    def _():
        y = acc_ref[...]
        y_ref[...] = y.astype(y_ref.dtype)                 # bf16 intermediate
        s = jnp.sum(y, axis=0, keepdims=True)              # (1, Cp)
        q = jnp.sum(y * y, axis=0, keepdims=True)          # (1, Cp)
        # stat blocks are (8, Cp) to stay sublane-aligned; row 0 is consumed.
        sum_ref[...] = jnp.broadcast_to(s, sum_ref.shape)
        sq_ref[...] = jnp.broadcast_to(q, sq_ref.shape)


# ---------------------------------------------------------------------------
# Kernel B2 (two-pass path): single-pass pre-folded affine + LeakyReLU.
# ---------------------------------------------------------------------------
def _bn_lrelu_kernel(y_ref, scale_ref, shift_ref, o_ref, *, slope):
    z = y_ref[...].astype(jnp.float32) * scale_ref[...] + shift_ref[...]
    o_ref[...] = jnp.where(z >= 0, z, slope * z)


def cblock_forward(x, w, gamma, beta, *, stride, pad, eps=1e-5, slope=0.2,
                   force_two_pass=False):
    """x: NCHW float32, w: OIHW float32 (PyTorch conv weight layout)."""
    N, Cin, H, W = x.shape
    Cout, Cin_w, KH, KW = w.shape
    assert Cin == Cin_w
    OH = (H + 2 * pad - KH) // stride + 1
    OW = (W + 2 * pad - KW) // stride + 1

    # ---- XLA glue: bf16 im2col (cast BEFORE the KH*KW-amplified materialization) ----
    # TODO(synk): implicit GEMM — keep x in HBM (memory_space=pl.ANY) and DMA shifted
    # spatial tiles per grid step to remove the KH*KW x im2col read amplification.
    x_bf = x.astype(jnp.bfloat16)
    x_pad = jnp.pad(x_bf, ((0, 0), (0, 0), (pad, pad), (pad, pad)))
    cols = []
    for ki in range(KH):
        for kj in range(KW):
            cols.append(x_pad[:, :, ki:ki + stride * OH:stride,
                              kj:kj + stride * OW:stride])        # (N, Cin, OH, OW)
    patches = jnp.stack(cols, axis=0).transpose(1, 3, 4, 2, 0)    # (N,OH,OW,Cin,KH*KW)
    M = N * OH * OW
    K = Cin * KH * KW
    patches = patches.reshape(M, K)
    w_mat = w.astype(jnp.bfloat16).reshape(Cout, K).T             # (K, Cout) bf16

    # ---- tiling: lane-dense Cout, MXU-aligned K ----
    Cp = _round_up(Cout, 128)
    Kp = _round_up(K, 128)
    if Kp <= 512:
        TK = Kp
    else:
        TK = 128
        for cand in (512, 384, 256, 128):                 # prefer >=256 for v6e/v7x MXU
            if Kp % cand == 0:
                TK = cand
                break
    n_k = Kp // TK
    m8 = _round_up(M, 8)

    w_bytes = Kp * Cp * 2
    w_resident = w_bytes <= 4 * 1024 * 1024               # hold whole bf16 weight in VMEM

    gamma_p = jnp.pad(gamma.astype(jnp.float32), (0, Cp - Cout)).reshape(1, Cp)
    beta_p = jnp.pad(beta.astype(jnp.float32), (0, Cp - Cout)).reshape(1, Cp)

    # conservative VMEM estimate for the fused single-M-tile path (v7x-safe)
    fused_bytes = (2 * m8 * Cp * 4                         # resident f32 output block
                   + 2 * m8 * Cp * 4                       # epilogue temporaries
                   + 2 * m8 * TK * 2                       # double-buffered patches tile
                   + (2 * w_bytes if w_resident else 4 * TK * Cp * 2))
    use_fused = (not force_two_pass) and fused_bytes <= 20 * 1024 * 1024

    vmem_params = dict(vmem_limit_bytes=32 * 1024 * 1024)

    if use_fused:
        Mp = m8
        patches_p = jnp.pad(patches, ((0, Mp - M), (0, Kp - K)))
        w_p = jnp.pad(w_mat, ((0, Kp - K), (0, Cp - Cout)))
        if w_resident:
            w_spec = pl.BlockSpec((Kp, Cp), lambda k: (0, 0))
        else:
            w_spec = pl.BlockSpec((TK, Cp), lambda k: (k, 0))

        out_flat = pl.pallas_call(
            functools.partial(_conv_bn_lrelu_fused_kernel, w_resident=w_resident,
                              tk=TK, m_real=M, eps=eps, slope=slope),
            out_shape=jax.ShapeDtypeStruct((Mp, Cp), jnp.float32),
            grid_spec=pltpu.PrefetchScalarGridSpec(
                num_scalar_prefetch=0,
                grid=(n_k,),
                in_specs=[pl.BlockSpec((Mp, TK), lambda k: (0, k)),
                          w_spec,
                          pl.BlockSpec((1, Cp), lambda k: (0, 0)),
                          pl.BlockSpec((1, Cp), lambda k: (0, 0))],
                out_specs=pl.BlockSpec((Mp, Cp), lambda k: (0, 0))),
            compiler_params=pltpu.CompilerParams(
                dimension_semantics=("arbitrary",), **vmem_params),
        )(patches_p, w_p, gamma_p, beta_p)
    else:
        # ---- M tiling: minimize zero-padding, guarantee >=2 tiles for v7x megacore ----
        if m8 <= 512:
            TM = m8
        else:
            TM = min((1024, 512, 256),
                     key=lambda tm: (_round_up(m8, tm) - m8, -tm))
            if _round_up(m8, TM) // TM < 2:
                TM //= 2                                   # 1024/512/256 -> still 8-aligned
        Mp = _round_up(m8, TM)
        n_m = Mp // TM

        patches_p = jnp.pad(patches, ((0, Mp - M), (0, Kp - K)))
        w_p = jnp.pad(w_mat, ((0, Kp - K), (0, Cp - Cout)))
        if w_resident:
            w_spec = pl.BlockSpec((Kp, Cp), lambda i, k: (0, 0))
        else:
            w_spec = pl.BlockSpec((TK, Cp), lambda i, k: (k, 0))

        # ---- pass 1: conv matmul + fused BN partial statistics, bf16 intermediate ----
        y_flat, psum, psq = pl.pallas_call(
            functools.partial(_conv_stats_kernel, w_resident=w_resident, tk=TK),
            out_shape=(jax.ShapeDtypeStruct((Mp, Cp), jnp.bfloat16),
                       jax.ShapeDtypeStruct((8 * n_m, Cp), jnp.float32),
                       jax.ShapeDtypeStruct((8 * n_m, Cp), jnp.float32)),
            grid_spec=pltpu.PrefetchScalarGridSpec(
                num_scalar_prefetch=0,
                grid=(n_m, n_k),
                in_specs=[pl.BlockSpec((TM, TK), lambda i, k: (i, k)), w_spec],
                out_specs=(pl.BlockSpec((TM, Cp), lambda i, k: (i, 0)),
                           pl.BlockSpec((8, Cp), lambda i, k: (i, 0)),
                           pl.BlockSpec((8, Cp), lambda i, k: (i, 0))),
                scratch_shapes=[pltpu.VMEM((TM, Cp), jnp.float32)]),
            compiler_params=pltpu.CompilerParams(
                dimension_semantics=("parallel", "arbitrary"), **vmem_params),
        )(patches_p, w_p)

        # ---- tiny stat reduction + affine fold (O(n_m * Cp), XLA) ----
        count = float(M)                   # zero-padded rows contribute nothing
        mean = jnp.sum(psum[::8], axis=0, keepdims=True) / count
        ex2 = jnp.sum(psq[::8], axis=0, keepdims=True) / count
        # NOTE: one-pass E[y^2]-mean^2 in f32, clamped against cancellation.
        var = jnp.maximum(ex2 - mean * mean, 0.0)
        scale = gamma_p * lax.rsqrt(var + eps)             # gamma padded with 0
        shift = beta_p - mean * scale

        # ---- pass 2: normalize + LeakyReLU ----
        out_flat = pl.pallas_call(
            functools.partial(_bn_lrelu_kernel, slope=slope),
            out_shape=jax.ShapeDtypeStruct((Mp, Cp), jnp.float32),
            grid_spec=pltpu.PrefetchScalarGridSpec(
                num_scalar_prefetch=0,
                grid=(n_m,),
                in_specs=[pl.BlockSpec((TM, Cp), lambda i: (i, 0)),
                          pl.BlockSpec((1, Cp), lambda i: (0, 0)),
                          pl.BlockSpec((1, Cp), lambda i: (0, 0))],
                out_specs=pl.BlockSpec((TM, Cp), lambda i: (i, 0))),
            compiler_params=pltpu.CompilerParams(
                dimension_semantics=("parallel",), **vmem_params),
        )(y_flat, scale, shift)

    # crop + back to NCHW to match the PyTorch module's output layout.
    # (Returning NHWC would save one full HBM pass if the consumer allows it.)
    return out_flat[:M, :Cout].reshape(N, OH, OW, Cout).transpose(0, 3, 1, 2)


def _reference(x, w, gamma, beta, *, stride, pad, eps=1e-5, slope=0.2):
    y = jax.lax.conv_general_dilated(
        x, w, window_strides=(stride, stride),
        padding=[(pad, pad), (pad, pad)],
        dimension_numbers=("NCHW", "OIHW", "NCHW"))
    mean = jnp.mean(y, axis=(0, 2, 3), keepdims=True)
    var = jnp.mean((y - mean) ** 2, axis=(0, 2, 3), keepdims=True)
    yn = ((y - mean) * jax.lax.rsqrt(var + eps)
          * gamma.reshape(1, -1, 1, 1) + beta.reshape(1, -1, 1, 1))
    return jnp.where(yn >= 0, yn, slope * yn)


if __name__ == "__main__":
    # Small DCGAN-discriminator-style CBlock: in_ch=4, out_ch=8, k=4, stride=2, pad=1
    N, Cin, H, W = 2, 4, 16, 16
    Cout, KH, KW = 8, 4, 4
    stride, pad = 2, 1

    key = jax.random.PRNGKey(0)
    kx, kw = jax.random.split(key)
    x = jax.random.normal(kx, (N, Cin, H, W), dtype=jnp.float32)
    w = jax.random.normal(kw, (Cout, Cin, KH, KW), dtype=jnp.float32) * 0.05
    gamma = jnp.ones((Cout,), dtype=jnp.float32)   # BatchNorm2d default weight
    beta = jnp.zeros((Cout,), dtype=jnp.float32)   # BatchNorm2d default bias

    ref = jax.block_until_ready(
        _reference(x, w, gamma, beta, stride=stride, pad=pad))

    # Fused single-kernel path (default at this size).
    out = jax.block_until_ready(
        cblock_forward(x, w, gamma, beta, stride=stride, pad=pad))
    assert out.shape == (N, Cout, H // 2, W // 2), out.shape
    # bf16 MXU inputs (f32 accumulation) -> slightly looser tolerance than pure f32
    np.testing.assert_allclose(np.asarray(out), np.asarray(ref),
                               atol=2e-2, rtol=2e-2)

    # Two-pass (large-M) path, exercised explicitly for coverage.
    out2 = jax.block_until_ready(
        cblock_forward(x, w, gamma, beta, stride=stride, pad=pad,
                       force_two_pass=True))
    np.testing.assert_allclose(np.asarray(out2), np.asarray(ref),
                               atol=2e-2, rtol=2e-2)

    print("KERNEL_OK")
</pallas_src>

<mosaic_0001>
module attributes {stable_mosaic.version = 11 : i64} {
  func.func @_conv_bn_lrelu_fused_kernel(%arg0: i32, %arg1: memref<128x128xbf16, #tpu.memory_space<vmem>>, %arg2: memref<128x128xbf16, #tpu.memory_space<vmem>>, %arg3: memref<1x128xf32, #tpu.memory_space<vmem>>, %arg4: memref<1x128xf32, #tpu.memory_space<vmem>>, %arg5: memref<128x128xf32, #tpu.memory_space<vmem>>) attributes {dimension_semantics = [#tpu.dimension_semantics<arbitrary>], iteration_bounds = array<i64: 1>, scalar_prefetch = 0 : i64, scratch_operands = 0 : i64, tpu.core_type = #tpu.core_type<tc>, window_params = [{transform_indices = @transform_0, window_bounds = array<i64: 128, 128>}, {pipeline_mode = #tpu.pipeline_mode<synchronous>, transform_indices = @transform_1, window_bounds = array<i64: 128, 128>}, {pipeline_mode = #tpu.pipeline_mode<synchronous>, transform_indices = @transform_2, window_bounds = array<i64: 1, 128>}, {pipeline_mode = #tpu.pipeline_mode<synchronous>, transform_indices = @transform_3, window_bounds = array<i64: 1, 128>}, {pipeline_mode = #tpu.pipeline_mode<synchronous>, transform_indices = @transform_4, window_bounds = array<i64: 128, 128>}]} {
    %c0_i32 = arith.constant 0 : i32
    %0 = arith.cmpi eq, %arg0, %c0_i32 : i32
    %1 = arith.extui %0 : i1 to i32
    %c0_i32_0 = arith.constant 0 : i32
    %2 = arith.cmpi ne, %1, %c0_i32_0 : i32
    scf.if %2 {
      %cst_9 = arith.constant 0.000000e+00 : f32
      %15 = vector.broadcast %cst_9 : f32 to vector<128x128xf32>
      %c0_10 = arith.constant 0 : index
      %c0_11 = arith.constant 0 : index
      %16 = vector.load %arg5[%c0_10, %c0_11] : memref<128x128xf32, #tpu.memory_space<vmem>>, vector<128x128xf32>
      tpu.vector_store %arg5[%c0_10, %c0_11], %15 {strides = array<i32>} : memref<128x128xf32, #tpu.memory_space<vmem>>, vector<128x128xf32>,
    } else {
    }
    %c128_i32 = arith.constant 128 : i32
    %3 = arith.muli %arg0, %c128_i32 : i32
    %4 = tpu.assume_multiple %3, 128 : i32
    %5 = arith.index_cast %4 : i32 to index
    %c0 = arith.constant 0 : index
    %6 = vector.load %arg2[%5, %c0] : memref<128x128xbf16, #tpu.memory_space<vmem>>, vector<128x128xbf16>
    %c0_1 = arith.constant 0 : index
    %c0_2 = arith.constant 0 : index
    %7 = vector.load %arg5[%c0_1, %c0_2] : memref<128x128xf32, #tpu.memory_space<vmem>>, vector<128x128xf32>
    %c0_3 = arith.constant 0 : index
    %c0_4 = arith.constant 0 : index
    %8 = vector.load %arg1[%c0_3, %c0_4] : memref<128x128xbf16, #tpu.memory_space<vmem>>, vector<128x128xbf16>
    %cst = arith.constant dense<0.000000e+00> : vector<128x128xf32>
    %9 = tpu.matmul %8, %6, %cst {dimension_numbers = #tpu.dot_dimension_numbers<[1], [0], [0], [1], [0, 0, 1, 1], [], []>} : vector<128x128xbf16>, vector<128x128xbf16>, vector<128x128xf32> -> vector<128x128xf32>
    %10 = arith.addf %7, %9 : vector<128x128xf32>
    %c0_5 = arith.constant 0 : index
    %c0_6 = arith.constant 0 : index
    %11 = vector.load %arg5[%c0_5, %c0_6] : memref<128x128xf32, #tpu.memory_space<vmem>>, vector<128x128xf32>
    tpu.vector_store %arg5[%c0_5, %c0_6], %10 {strides = array<i32>} : memref<128x128xf32, #tpu.memory_space<vmem>>, vector<128x128xf32>,
    %c0_i32_7 = arith.constant 0 : i32
    %12 = arith.cmpi eq, %arg0, %c0_i32_7 : i32
    %13 = arith.extui %12 : i1 to i32
    %c0_i32_8 = arith.constant 0 : i32
    %14 = arith.cmpi ne, %13, %c0_i32_8 : i32
    scf.if %14 {
      %c0_9 = arith.constant 0 : index
      %c0_10 = arith.constant 0 : index
      %15 = vector.load %arg5[%c0_9, %c0_10] : memref<128x128xf32, #tpu.memory_space<vmem>>, vector<128x128xf32>
      %cst_11 = arith.constant dense<0.000000e+00> : vector<128xf32>
      %16 = vector.multi_reduction <add>, %15, %cst_11 [0] : vector<128x128xf32> to vector<128xf32>
      %17 = vector.shape_cast %16 : vector<128xf32> to vector<1x128xf32>
      %cst_12 = arith.constant 7.812500e-03 : f32
      %18 = vector.broadcast %cst_12 : f32 to vector<1x128xf32>
      %19 = arith.mulf %17, %18 : vector<1x128xf32>
      %20 = tpu.iota {dimensions = array<i32: 0>} : vector<128x128xi32>
      %c128_i32_13 = arith.constant 128 : i32
      %21 = vector.broadcast %c128_i32_13 : i32 to vector<128x128xi32>
      %22 = arith.cmpi slt, %20, %21 : vector<128x128xi32>
      %23 = vector.broadcast %19 : vector<1x128xf32> to vector<128x128xf32>
      %24 = arith.subf %15, %23 : vector<128x128xf32>
      %cst_14 = arith.constant 0.000000e+00 : f32
      %25 = vector.broadcast %cst_14 : f32 to vector<128x128xf32>
      %26 = arith.select %22, %24, %25 : vector<128x128xi1>, vector<128x128xf32>
      %27 = arith.mulf %26, %26 : vector<128x128xf32>
      %cst_15 = arith.constant dense<0.000000e+00> : vector<128xf32>
      %28 = vector.multi_reduction <add>, %27, %cst_15 [0] : vector<128x128xf32> to vector<128xf32>
      %29 = vector.shape_cast %28 : vector<128xf32> to vector<1x128xf32>
      %cst_16 = arith.constant 7.812500e-03 : f32
      %30 = vector.broadcast %cst_16 : f32 to vector<1x128xf32>
      %31 = arith.mulf %29, %30 : vector<1x128xf32>
      %c0_17 = arith.constant 0 : index
      %c0_18 = arith.constant 0 : index
      %32 = vector.load %arg3[%c0_17, %c0_18] : memref<1x128xf32, #tpu.memory_space<vmem>>, vector<1x128xf32>
      %cst_19 = arith.constant 9.99999974E-6 : f32
      %33 = vector.broadcast %cst_19 : f32 to vector<1x128xf32>
      %34 = arith.addf %31, %33 : vector<1x128xf32>
      %35 = math.rsqrt %34 : vector<1x128xf32>
      %36 = arith.mulf %32, %35 : vector<1x128xf32>
      %c0_20 = arith.constant 0 : index
      %c0_21 = arith.constant 0 : index
      %37 = vector.load %arg4[%c0_20, %c0_21] : memref<1x128xf32, #tpu.memory_space<vmem>>, vector<1x128xf32>
      %38 = arith.mulf %19, %36 : vector<1x128xf32>
      %39 = arith.subf %37, %38 : vector<1x128xf32>
      %40 = vector.broadcast %36 : vector<1x128xf32> to vector<128x128xf32>
      %41 = arith.mulf %15, %40 : vector<128x128xf32>
      %42 = vector.broadcast %39 : vector<1x128xf32> to vector<128x128xf32>
      %43 = arith.addf %41, %42 : vector<128x128xf32>
      %cst_22 = arith.constant 0.000000e+00 : f32
      %44 = vector.broadcast %cst_22 : f32 to vector<128x128xf32>
      %45 = arith.cmpf oge, %43, %44 : vector<128x128xf32>
      %cst_23 = arith.constant 2.000000e-01 : f32
      %46 = vector.broadcast %cst_23 : f32 to vector<128x128xf32>
      %47 = arith.mulf %46, %43 : vector<128x128xf32>
      %48 = arith.select %45, %43, %47 : vector<128x128xi1>, vector<128x128xf32>
      %c0_24 = arith.constant 0 : index
      %c0_25 = arith.constant 0 : index
      %49 = vector.load %arg5[%c0_24, %c0_25] : memref<128x128xf32, #tpu.memory_space<vmem>>, vector<128x128xf32>
      tpu.vector_store %arg5[%c0_24, %c0_25], %48 {strides = array<i32>} : memref<128x128xf32, #tpu.memory_space<vmem>>, vector<128x128xf32>,
    } else {
    }
    return
  }
  func.func @transform_0(%arg0: i32) -> (i32, i32) {
    %c0_i32 = arith.constant 0 : i32
    %c0_i32_0 = arith.constant 0 : i32
    return %c0_i32, %arg0 : i32, i32
  }
  func.func @transform_1(%arg0: i32) -> (i32, i32) {
    %c0_i32 = arith.constant 0 : i32
    %c0_i32_0 = arith.constant 0 : i32
    %c0_i32_1 = arith.constant 0 : i32
    return %c0_i32, %c0_i32_0 : i32, i32
  }
  func.func @transform_2(%arg0: i32) -> (i32, i32) {
    %c0_i32 = arith.constant 0 : i32
    %c0_i32_0 = arith.constant 0 : i32
    %c0_i32_1 = arith.constant 0 : i32
    return %c0_i32, %c0_i32_0 : i32, i32
  }
  func.func @transform_3(%arg0: i32) -> (i32, i32) {
    %c0_i32 = arith.constant 0 : i32
    %c0_i32_0 = arith.constant 0 : i32
    %c0_i32_1 = arith.constant 0 : i32
    return %c0_i32, %c0_i32_0 : i32, i32
  }
  func.func @transform_4(%arg0: i32) -> (i32, i32) {
    %c0_i32 = arith.constant 0 : i32
    %c0_i32_0 = arith.constant 0 : i32
    %c0_i32_1 = arith.constant 0 : i32
    return %c0_i32, %c0_i32_0 : i32, i32
  }
}

</mosaic_0001>

<llo_original>
// kernel: tpu_custom_call.1
$region0: #{tpu_custom_call.1}
  #allocation0 [shape = 'u32[]', space=smem, size = 0x4, offset = 0x4, fixed_abs, tag = 'smem constant byte address 0x4 - core index']
  #allocation1 [shape = 'u32[144,128]{1,0:T(1,128)}', space=vmem, size = 0x12000, scoped, tag = 'internal scratch']
  %s0 = inlined_call_operand.hbm [shape: bf16[128,128], index: 0, kind: input, shape index: {}]
  %s1 = inlined_call_operand.hbm [shape: bf16[128,128], index: 1, kind: input, shape index: {}]
  %s2 = inlined_call_operand.vmem [shape: f32[1,128], index: 2, kind: input, shape index: {}]
  %s3 = inlined_call_operand.vmem [shape: f32[1,128], index: 3, kind: input, shape index: {}]
  %s4 = inlined_call_operand.hbm [shape: f32[128,128], index: 4, kind: output, shape index: {}]
  %s5 = sld [smem:[#allocation0]]
  $region42: #{tpu_custom_call.1} parent=0
    _
  %s7 = ssub.s32 1, %s5
  %s8 = scalar_select 0, %s7, %s5
  $region1: #{tpu_custom_call.1} parent=0
    #allocation2 [shape = 'u8[32768]{0}', space=vmem, size = 0x8000, scoped, tag = 'input window, operand 0, single buffered']
    #allocation3 [shape = 's32[1]{0}', space=sflag, size = 0x4, scoped, tag = 'scoped memory for tpu_custom_call.1']
    #allocation4 [shape = 's32[1]{0}', space=sflag, size = 0x4, scoped, tag = 'scoped memory for tpu_custom_call.1']
    #allocation5 [shape = 'u8[32768]{0}', space=vmem, size = 0x8000, scoped, tag = 'input window, operand 1, single buffered']
    #allocation6 [shape = 's32[1]{0}', space=sflag, size = 0x4, scoped, tag = 'scoped memory for tpu_custom_call.1']
    #allocation7 [shape = 'u8[65536]{0}', space=vmem, size = 0x10000, scoped, tag = 'output window, operand 0, single buffered']
    %9 = vsyncpa [#allocation3], 0
    %10 = vsyncpa [#allocation6], 0
    %11 = vsyncpa [#allocation4], 0
    // Predicated region
    $region2: #{tpu_custom_call.1} parent=1 // pred_check
      _
    $region3: #{tpu_custom_call.1} parent=1 // pred_check_branch
      %13 = sbr.rel (0) target = $region5
    $region4: #{tpu_custom_call.1} parent=1 // pred_region
      %s15 = ssub.s32 1024, 1024
      %16 = vsyncadd [#allocation3], %s15
      %s17 = sshll.u32 [#allocation2], 4
      %s18 = int_to_ptr.vmem [resolvable:$true] %s17
      %23 = dma.hbm_to_vmem [thread:$0]  %s0, 1024, %s18, [#allocation3], 64, 64, 4
    $region5: #{tpu_custom_call.1} parent=1 // pred_fallthru
      _
    // Predicated region
    $region6: #{tpu_custom_call.1} parent=1 // pred_check
      _
    $region7: #{tpu_custom_call.1} parent=1 // pred_check_branch
      %25 = sbr.rel (0) target = $region9
    $region8: #{tpu_custom_call.1} parent=1 // pred_region
      %s27 = ssub.s32 1024, 1024
      %28 = vsyncadd [#allocation6], %s27
      %s29 = sshll.u32 [#allocation5], 4
      %s30 = int_to_ptr.vmem [resolvable:$true] %s29
      %35 = dma.hbm_to_vmem [thread:$0]  %s1, 1024, %s30, [#allocation6], 64, 64, 4
    $region9: #{tpu_custom_call.1} parent=1 // pred_fallthru
      _
    // Predicated region
    $region10: #{tpu_custom_call.1} parent=1 // pred_check
      _
    $region11: #{tpu_custom_call.1} parent=1 // pred_check_branch
      %37 = sbr.rel (0) target = $region13
    $region12: #{tpu_custom_call.1} parent=1 // pred_region
      _
    $region13: #{tpu_custom_call.1} parent=1 // pred_fallthru
      _
    // Predicated region
    $region14: #{tpu_custom_call.1} parent=1 // pred_check
      _
    $region15: #{tpu_custom_call.1} parent=1 // pred_check_branch
      %39 = sbr.rel (0) target = $region17
    $region16: #{tpu_custom_call.1} parent=1 // pred_region
      _
    $region17: #{tpu_custom_call.1} parent=1 // pred_fallthru
      _
    // Predicated region
    $region18: #{tpu_custom_call.1} parent=1 // pred_check
      _
    $region19: #{tpu_custom_call.1} parent=1 // pred_check_branch
      %41 = sbr.rel (0) target = $region21
    $region20: #{tpu_custom_call.1} parent=1 // pred_region
      %42 = dma.done [#allocation3], 1024
    $region21: #{tpu_custom_call.1} parent=1 // pred_fallthru
      _
    // Predicated region
    $region22: #{tpu_custom_call.1} parent=1 // pred_check
      _
    $region23: #{tpu_custom_call.1} parent=1 // pred_check_branch
      %44 = sbr.rel (0) target = $region25
    $region24: #{tpu_custom_call.1} parent=1 // pred_region
      %45 = dma.done [#allocation6], 1024
    $region25: #{tpu_custom_call.1} parent=1 // pred_fallthru
      _
    %p47 = scmp.eq.s32.totalorder 0, 0
    // Predicated region
    $region26: #{tpu_custom_call.1} parent=1 // pred_check
      %p48 = pneg %p47
    $region27: #{tpu_custom_call.1} parent=1 // pred_check_branch
      %50 = sbr.rel (%p48) target = $region29
    $region28: #{tpu_custom_call.1} parent=1 // pred_region
      %51 = vst [vmem:[#allocation7] sm:$0xff] 0.0
      %52 = vst [vmem:[#allocation7 + $0x8] sm:$0xff] 0.0
      %53 = vst [vmem:[#allocation7 + $0x10] sm:$0xff] 0.0
      %54 = vst [vmem:[#allocation7 + $0x18] sm:$0xff] 0.0
      %55 = vst [vmem:[#allocation7 + $0x20] sm:$0xff] 0.0
      %56 = vst [vmem:[#allocation7 + $0x28] sm:$0xff] 0.0
      %57 = vst [vmem:[#allocation7 + $0x30] sm:$0xff] 0.0
      %58 = vst [vmem:[#allocation7 + $0x38] sm:$0xff] 0.0
      %59 = vst [vmem:[#allocation7 + $0x40] sm:$0xff] 0.0
      %60 = vst [vmem:[#allocation7 + $0x48] sm:$0xff] 0.0
      %61 = vst [vmem:[#allocation7 + $0x50] sm:$0xff] 0.0
      %62 = vst [vmem:[#allocation7 + $0x58] sm:$0xff] 0.0
      %63 = vst [vmem:[#allocation7 + $0x60] sm:$0xff] 0.0
      %64 = vst [vmem:[#allocation7 + $0x68] sm:$0xff] 0.0
      %65 = vst [vmem:[#allocation7 + $0x70] sm:$0xff] 0.0
      %66 = vst [vmem:[#allocation7 + $0x78] sm:$0xff] 0.0
    $region29: #{tpu_custom_call.1} parent=1 // pred_fallthru
      _
    %s67 = smul.u32 0, 128
    %s68 = sshra.s32 %s67, 3
    %s69 = sand.u32 %s67, 7
    %s70 = smul.addr %s68, 4
    %s71 = scalar_lea.vmem [#allocation5], %s70
    %v72 = vld [vmem:[%s71] sm:$0xf]
    %v73 = vld [vmem:[%s71 + $0x4] sm:$0xf]
    %v74 = vld [vmem:[%s71 + $0x8] sm:$0xf]
    %v75 = vld [vmem:[%s71 + $0xc] sm:$0xf]
    %v76 = vld [vmem:[%s71 + $0x10] sm:$0xf]
    %v77 = vld [vmem:[%s71 + $0x14] sm:$0xf]
    %v78 = vld [vmem:[%s71 + $0x18] sm:$0xf]
    %v79 = vld [vmem:[%s71 + $0x1c] sm:$0xf]
    %v80 = vld [vmem:[%s71 + $0x20] sm:$0xf]
    %v81 = vld [vmem:[%s71 + $0x24] sm:$0xf]
    %v82 = vld [vmem:[%s71 + $0x28] sm:$0xf]
    %v83 = vld [vmem:[%s71 + $0x2c] sm:$0xf]
    %v84 = vld [vmem:[%s71 + $0x30] sm:$0xf]
    %v85 = vld [vmem:[%s71 + $0x34] sm:$0xf]
    %v86 = vld [vmem:[%s71 + $0x38] sm:$0xf]
    %v87 = vld [vmem:[%s71 + $0x3c] sm:$0xf]
    %v88 = vld [vmem:[#allocation7] sm:$0xff]
    %v89 = vld [vmem:[#allocation7 + $0x8] sm:$0xff]
    %v90 = vld [vmem:[#allocation7 + $0x10] sm:$0xff]
    %v91 = vld [vmem:[#allocation7 + $0x18] sm:$0xff]
    %v92 = vld [vmem:[#allocation7 + $0x20] sm:$0xff]
    %v93 = vld [vmem:[#allocation7 + $0x28] sm:$0xff]
    %v94 = vld [vmem:[#allocation7 + $0x30] sm:$0xff]
    %v95 = vld [vmem:[#allocation7 + $0x38] sm:$0xff]
    %v96 = vld [vmem:[#allocation7 + $0x40] sm:$0xff]
    %v97 = vld [vmem:[#allocation7 + $0x48] sm:$0xff]
    %v98 = vld [vmem:[#allocation7 + $0x50] sm:$0xff]
    %v99 = vld [vmem:[#allocation7 + $0x58] sm:$0xff]
    %v100 = vld [vmem:[#allocation7 + $0x60] sm:$0xff]
    %v101 = vld [vmem:[#allocation7 + $0x68] sm:$0xff]
    %v102 = vld [vmem:[#allocation7 + $0x70] sm:$0xff]
    %v103 = vld [vmem:[#allocation7 + $0x78] sm:$0xff]
    %v104 = vld [vmem:[#allocation2] sm:$0xf]
    %v105 = vld [vmem:[#allocation2 + $0x4] sm:$0xf]
    %v106 = vld [vmem:[#allocation2 + $0x8] sm:$0xf]
    %v107 = vld [vmem:[#allocation2 + $0xc] sm:$0xf]
    %v108 = vld [vmem:[#allocation2 + $0x10] sm:$0xf]
    %v109 = vld [vmem:[#allocation2 + $0x14] sm:$0xf]
    %v110 = vld [vmem:[#allocation2 + $0x18] sm:$0xf]
    %v111 = vld [vmem:[#allocation2 + $0x1c] sm:$0xf]
    %v112 = vld [vmem:[#allocation2 + $0x20] sm:$0xf]
    %v113 = vld [vmem:[#allocation2 + $0x24] sm:$0xf]
    %v114 = vld [vmem:[#allocation2 + $0x28] sm:$0xf]
    %v115 = vld [vmem:[#allocation2 + $0x2c] sm:$0xf]
    %v116 = vld [vmem:[#allocation2 + $0x30] sm:$0xf]
    %v117 = vld [vmem:[#allocation2 + $0x34] sm:$0xf]
    %v118 = vld [vmem:[#allocation2 + $0x38] sm:$0xf]
    %v119 = vld [vmem:[#allocation2 + $0x3c] sm:$0xf]
    %v136 = vunpack.c.l.b16 %v104
    %v137 = vunpack.c.l.b16 %v105
    %v138 = vunpack.c.l.b16 %v106
    %v139 = vunpack.c.l.b16 %v107
    %v140 = vunpack.c.l.b16 %v108
    %v141 = vunpack.c.l.b16 %v109
    %v142 = vunpack.c.l.b16 %v110
    %v143 = vunpack.c.l.b16 %v111
    %v144 = vunpack.c.l.b16 %v112
    %v145 = vunpack.c.l.b16 %v113
    %v146 = vunpack.c.l.b16 %v114
    %v147 = vunpack.c.l.b16 %v115
    %v148 = vunpack.c.l.b16 %v116
    %v149 = vunpack.c.l.b16 %v117
    %v150 = vunpack.c.l.b16 %v118
    %v151 = vunpack.c.l.b16 %v119
    %v152 = vpack.c.b16 %v137, %v136
    %v153 = vpack.c.b16 %v139, %v138
    %v154 = vpack.c.b16 %v141, %v140
    %v155 = vpack.c.b16 %v143, %v142
    %v156 = vpack.c.b16 %v145, %v144
    %v157 = vpack.c.b16 %v147, %v146
    %v158 = vpack.c.b16 %v149, %v148
    %v159 = vpack.c.b16 %v151, %v150
    %v184 = vunpack.c.l.b16 %v72
    %v185 = vunpack.c.l.b16 %v73
    %v186 = vunpack.c.l.b16 %v74
    %v187 = vunpack.c.l.b16 %v75
    %v188 = vunpack.c.l.b16 %v76
    %v189 = vunpack.c.l.b16 %v77
    %v190 = vunpack.c.l.b16 %v78
    %v191 = vunpack.c.l.b16 %v79
    %v192 = vunpack.c.l.b16 %v80
    %v193 = vunpack.c.l.b16 %v81
    %v194 = vunpack.c.l.b16 %v82
    %v195 = vunpack.c.l.b16 %v83
    %v196 = vunpack.c.l.b16 %v84
    %v197 = vunpack.c.l.b16 %v85
    %v198 = vunpack.c.l.b16 %v86
    %v199 = vunpack.c.l.b16 %v87
    %v200 = vpack.c.b16 %v185, %v184
    %v201 = vpack.c.b16 %v187, %v186
    %v202 = vpack.c.b16 %v189, %v188
    %v203 = vpack.c.b16 %v191, %v190
    %v204 = vpack.c.b16 %v193, %v192
    %v205 = vpack.c.b16 %v195, %v194
    %v206 = vpack.c.b16 %v197, %v196
    %v207 = vpack.c.b16 %v199, %v198
    %216 = vmatprep.subr.bf16.mxu0 0
    %217 = vmatpush1.bf16.msra.mxu0 %v200
    %218 = vmatprep.subr.bf16.mxu0 0
    %219 = vmatpush1.bf16.msra.mxu0 %v201
    %220 = vmatprep.subr.bf16.mxu0 0
    %221 = vmatpush1.bf16.msra.mxu0 %v202
    %222 = vmatprep.subr.bf16.mxu0 0
    %223 = vmatpush1.bf16.msra.mxu0 %v203
    %224 = vmatprep.subr.bf16.mxu0 0
    %225 = vmatpush1.bf16.msra.mxu0 %v204
    %226 = vmatprep.subr.bf16.mxu0 0
    %227 = vmatpush1.bf16.msra.mxu0 %v205
    %228 = vmatprep.subr.bf16.mxu0 0
    %229 = vmatpush1.bf16.msra.mxu0 %v206
    %230 = vmatprep.subr.bf16.mxu0 0
    %231 = vmatpush1.bf16.msra.mxu0 %v207
    %232 = vmatprep.subr.bf16.mxu0 0
    %233 = vmatpush1.bf16.msra.mxu0 0
    %234 = vmatprep.subr.bf16.mxu0 0
    %235 = vmatpush1.bf16.msra.mxu0 0
    %236 = vmatprep.subr.bf16.mxu0 0
    %237 = vmatpush1.bf16.msra.mxu0 0
    %238 = vmatprep.subr.bf16.mxu0 0
    %239 = vmatpush1.bf16.msra.mxu0 0
    %240 = vmatprep.subr.bf16.mxu0 0
    %241 = vmatpush1.bf16.msra.mxu0 0
    %242 = vmatprep.subr.bf16.mxu0 0
    %243 = vmatpush1.bf16.msra.mxu0 0
    %244 = vmatprep.subr.bf16.mxu0 0
    %245 = vmatpush1.bf16.msra.mxu0 0
    %246 = vmatprep.subr.bf16.mxu0 0
    %247 = vmatpush1.bf16.msra.mxu0 0
    %248 = vmatprep.mubr.bf16.mxu0 0
    %249 = vmatmul.mubr.bf16.gmra.mrb[0].mxu0 %v152
    %v250 = vpop.f32.mrb[0].mxu0
    %v251 = vadd.f32 0.0, %v250
    %v252 = vpop.f32.mrb[0].mxu0
    %v253 = vpop.f32.mrb[0].mxu0
    %v254 = vadd.f32 0.0, %v253
    %v255 = vpop.f32.mrb[0].mxu0
    %256 = vmatprep.mubr.bf16.mxu0 0
    %257 = vmatmul.mubr.bf16.gmra.mrb[0].mxu0 %v153
    %v258 = vpop.f32.mrb[0].mxu0
    %v259 = vadd.f32 0.0, %v258
    %v260 = vpop.f32.mrb[0].mxu0
    %v261 = vpop.f32.mrb[0].mxu0
    %v262 = vadd.f32 0.0, %v261
    %v263 = vpop.f32.mrb[0].mxu0
    %264 = vmatprep.mubr.bf16.mxu0 0
    %265 = vmatmul.mubr.bf16.gmra.mrb[0].mxu0 %v154
    %v266 = vpop.f32.mrb[0].mxu0
    %v267 = vadd.f32 0.0, %v266
    %v268 = vpop.f32.mrb[0].mxu0
    %v269 = vpop.f32.mrb[0].mxu0
    %v270 = vadd.f32 0.0, %v269
    %v271 = vpop.f32.mrb[0].mxu0
    %272 = vmatprep.mubr.bf16.mxu0 0
    %273 = vmatmul.mubr.bf16.gmra.mrb[0].mxu0 %v155
    %v274 = vpop.f32.mrb[0].mxu0
    %v275 = vadd.f32 0.0, %v274
    %v276 = vpop.f32.mrb[0].mxu0
    %v277 = vpop.f32.mrb[0].mxu0
    %v278 = vadd.f32 0.0, %v277
    %v279 = vpop.f32.mrb[0].mxu0
    %280 = vmatprep.mubr.bf16.mxu0 0
    %281 = vmatmul.mubr.bf16.gmra.mrb[0].mxu0 %v156
    %v282 = vpop.f32.mrb[0].mxu0
    %v283 = vadd.f32 0.0, %v282
    %v284 = vpop.f32.mrb[0].mxu0
    %v285 = vpop.f32.mrb[0].mxu0
    %v286 = vadd.f32 0.0, %v285
    %v287 = vpop.f32.mrb[0].mxu0
    %288 = vmatprep.mubr.bf16.mxu0 0
    %289 = vmatmul.mubr.bf16.gmra.mrb[0].mxu0 %v157
    %v290 = vpop.f32.mrb[0].mxu0
    %v291 = vadd.f32 0.0, %v290
    %v292 = vpop.f32.mrb[0].mxu0
    %v293 = vpop.f32.mrb[0].mxu0
    %v294 = vadd.f32 0.0, %v293
    %v295 = vpop.f32.mrb[0].mxu0
    %296 = vmatprep.mubr.bf16.mxu0 0
    %297 = vmatmul.mubr.bf16.gmra.mrb[0].mxu0 %v158
    %v298 = vpop.f32.mrb[0].mxu0
    %v299 = vadd.f32 0.0, %v298
    %v300 = vpop.f32.mrb[0].mxu0
    %v301 = vpop.f32.mrb[0].mxu0
    %v302 = vadd.f32 0.0, %v301
    %v303 = vpop.f32.mrb[0].mxu0
    %304 = vmatprep.mubr.bf16.mxu0 0
    %305 = vmatmul.mubr.bf16.gmra.mrb[0].mxu0 %v159
    %v306 = vpop.f32.mrb[0].mxu0
    %v307 = vadd.f32 0.0, %v306
    %v308 = vpop.f32.mrb[0].mxu0
    %v309 = vpop.f32.mrb[0].mxu0
    %v310 = vadd.f32 0.0, %v309
    %v311 = vpop.f32.mrb[0].mxu0
    %312 = vdwg.mxu0
    %v313 = vadd.f32 %v88, %v251
    %v314 = vadd.f32 %v89, %v254
    %v315 = vadd.f32 %v90, %v259
    %v316 = vadd.f32 %v91, %v262
    %v317 = vadd.f32 %v92, %v267
    %v318 = vadd.f32 %v93, %v270
    %v319 = vadd.f32 %v94, %v275
    %v320 = vadd.f32 %v95, %v278
    %v321 = vadd.f32 %v96, %v283
    %v322 = vadd.f32 %v97, %v286
    %v323 = vadd.f32 %v98, %v291
    %v324 = vadd.f32 %v99, %v294
    %v325 = vadd.f32 %v100, %v299
    %v326 = vadd.f32 %v101, %v302
    %v327 = vadd.f32 %v102, %v307
    %v328 = vadd.f32 %v103, %v310
    %329 = vst [vmem:[#allocation7] sm:$0xff] %v313
    %330 = vst [vmem:[#allocation7 + $0x8] sm:$0xff] %v314
    %331 = vst [vmem:[#allocation7 + $0x10] sm:$0xff] %v315
    %332 = vst [vmem:[#allocation7 + $0x18] sm:$0xff] %v316
    %333 = vst [vmem:[#allocation7 + $0x20] sm:$0xff] %v317
    %334 = vst [vmem:[#allocation7 + $0x28] sm:$0xff] %v318
    %335 = vst [vmem:[#allocation7 + $0x30] sm:$0xff] %v319
    %336 = vst [vmem:[#allocation7 + $0x38] sm:$0xff] %v320
    %337 = vst [vmem:[#allocation7 + $0x40] sm:$0xff] %v321
    %338 = vst [vmem:[#allocation7 + $0x48] sm:$0xff] %v322
    %339 = vst [vmem:[#allocation7 + $0x50] sm:$0xff] %v323
    %340 = vst [vmem:[#allocation7 + $0x58] sm:$0xff] %v324
    %341 = vst [vmem:[#allocation7 + $0x60] sm:$0xff] %v325
    %342 = vst [vmem:[#allocation7 + $0x68] sm:$0xff] %v326
    %343 = vst [vmem:[#allocation7 + $0x70] sm:$0xff] %v327
    %344 = vst [vmem:[#allocation7 + $0x78] sm:$0xff] %v328
    // Predicated region
    $region30: #{tpu_custom_call.1} parent=1 // pred_check
      %p345 = pneg %p47
    $region31: #{tpu_custom_call.1} parent=1 // pred_check_branch
      %347 = sbr.rel (%p345) target = $region33
    $region32: #{tpu_custom_call.1} parent=1 // pred_region
      %v348 = vld [vmem:[#allocation7] sm:$0xff]
      %v349 = vld [vmem:[#allocation7 + $0x8] sm:$0xff]
      %v350 = vld [vmem:[#allocation7 + $0x10] sm:$0xff]
      %v351 = vld [vmem:[#allocation7 + $0x18] sm:$0xff]
      %v352 = vld [vmem:[#allocation7 + $0x20] sm:$0xff]
      %v353 = vld [vmem:[#allocation7 + $0x28] sm:$0xff]
      %v354 = vld [vmem:[#allocation7 + $0x30] sm:$0xff]
      %v355 = vld [vmem:[#allocation7 + $0x38] sm:$0xff]
      %v356 = vld [vmem:[#allocation7 + $0x40] sm:$0xff]
      %v357 = vld [vmem:[#allocation7 + $0x48] sm:$0xff]
      %v358 = vld [vmem:[#allocation7 + $0x50] sm:$0xff]
      %v359 = vld [vmem:[#allocation7 + $0x58] sm:$0xff]
      %v360 = vld [vmem:[#allocation7 + $0x60] sm:$0xff]
      %v361 = vld [vmem:[#allocation7 + $0x68] sm:$0xff]
      %v362 = vld [vmem:[#allocation7 + $0x70] sm:$0xff]
      %v363 = vld [vmem:[#allocation7 + $0x78] sm:$0xff]
      %v364 = vadd.f32 %v348, %v349
      %v365 = vadd.f32 %v364, %v350
      %v366 = vadd.f32 %v365, %v351
      %v367 = vadd.f32 %v366, %v352
      %v368 = vadd.f32 %v367, %v353
      %v369 = vadd.f32 %v368, %v354
      %v370 = vadd.f32 %v369, %v355
      %v371 = vadd.f32 %v370, %v356
      %v372 = vadd.f32 %v371, %v357
      %v373 = vadd.f32 %v372, %v358
      %v374 = vadd.f32 %v373, %v359
      %v375 = vadd.f32 %v374, %v360
      %v376 = vadd.f32 %v375, %v361
      %v377 = vadd.f32 %v376, %v362
      %v378 = vadd.f32 %v377, %v363
      %v379 = vrot.slane %v378, 4
      %v380 = vadd.f32 %v378, %v379
      %v381 = vrot.slane %v380, 2
      %v382 = vadd.f32 %v380, %v381
      %v383 = vrot.slane %v382, 1
      %v384 = vadd.f32 %v382, %v383
      %v385 = vmul.f32 %v384, 0.0078125
      %v386 = vlaneseq
      %v387 = vshrl.u32 %v386, 7
      %v388 = vadd.s32 %v387, 8
      %v389 = vadd.s32 %v387, 16
      %v390 = vadd.s32 %v387, 24
      %v391 = vadd.s32 %v387, 32
      %v392 = vadd.s32 %v387, 40
      %v393 = vadd.s32 %v387, 48
      %v394 = vadd.s32 %v387, 56
      %v395 = vadd.s32 %v387, 64
      %v396 = vadd.s32 %v387, 72
      %v397 = vadd.s32 %v387, 80
      %v398 = vadd.s32 %v387, 88
      %v399 = vadd.s32 %v387, 96
      %v400 = vadd.s32 %v387, 104
      %v401 = vadd.s32 %v387, 112
      %v402 = vadd.s32 %v387, 120
      %vm403 = vcmp.lt.s32.totalorder %v387, 128
      %vm404 = vcmp.lt.s32.totalorder %v388, 128
      %vm405 = vcmp.lt.s32.totalorder %v389, 128
      %vm406 = vcmp.lt.s32.totalorder %v390, 128
      %vm407 = vcmp.lt.s32.totalorder %v391, 128
      %vm408 = vcmp.lt.s32.totalorder %v392, 128
      %vm409 = vcmp.lt.s32.totalorder %v393, 128
      %vm410 = vcmp.lt.s32.totalorder %v394, 128
      %vm411 = vcmp.lt.s32.totalorder %v395, 128
      %vm412 = vcmp.lt.s32.totalorder %v396, 128
      %vm413 = vcmp.lt.s32.totalorder %v397, 128
      %vm414 = vcmp.lt.s32.totalorder %v398, 128
      %vm415 = vcmp.lt.s32.totalorder %v399, 128
      %vm416 = vcmp.lt.s32.totalorder %v400, 128
      %vm417 = vcmp.lt.s32.totalorder %v401, 128
      %vm418 = vcmp.lt.s32.totalorder %v402, 128
      %v419 = vsub.f32 %v348, %v385
      %v420 = vsub.f32 %v349, %v385
      %v421 = vsub.f32 %v350, %v385
      %v422 = vsub.f32 %v351, %v385
      %v423 = vsub.f32 %v352, %v385
      %v424 = vsub.f32 %v353, %v385
      %v425 = vsub.f32 %v354, %v385
      %v426 = vsub.f32 %v355, %v385
      %v427 = vsub.f32 %v356, %v385
      %v428 = vsub.f32 %v357, %v385
      %v429 = vsub.f32 %v358, %v385
      %v430 = vsub.f32 %v359, %v385
      %v431 = vsub.f32 %v360, %v385
      %v432 = vsub.f32 %v361, %v385
      %v433 = vsub.f32 %v362, %v385
      %v434 = vsub.f32 %v363, %v385
      %v435 = vsel %vm403, %v419, 0.0
      %v436 = vsel %vm404, %v420, 0.0
      %v437 = vsel %vm405, %v421, 0.0
      %v438 = vsel %vm406, %v422, 0.0
      %v439 = vsel %vm407, %v423, 0.0
      %v440 = vsel %vm408, %v424, 0.0
      %v441 = vsel %vm409, %v425, 0.0
      %v442 = vsel %vm410, %v426, 0.0
      %v443 = vsel %vm411, %v427, 0.0
      %v444 = vsel %vm412, %v428, 0.0
      %v445 = vsel %vm413, %v429, 0.0
      %v446 = vsel %vm414, %v430, 0.0
      %v447 = vsel %vm415, %v431, 0.0
      %v448 = vsel %vm416, %v432, 0.0
      %v449 = vsel %vm417, %v433, 0.0
      %v450 = vsel %vm418, %v434, 0.0
      %v451 = vmul.f32 %v435, %v435
      %v452 = vmul.f32 %v436, %v436
      %v453 = vmul.f32 %v437, %v437
      %v454 = vmul.f32 %v438, %v438
      %v455 = vmul.f32 %v439, %v439
      %v456 = vmul.f32 %v440, %v440
      %v457 = vmul.f32 %v441, %v441
      %v458 = vmul.f32 %v442, %v442
      %v459 = vmul.f32 %v443, %v443
      %v460 = vmul.f32 %v444, %v444
      %v461 = vmul.f32 %v445, %v445
      %v462 = vmul.f32 %v446, %v446
      %v463 = vmul.f32 %v447, %v447
      %v464 = vmul.f32 %v448, %v448
      %v465 = vmul.f32 %v449, %v449
      %v466 = vmul.f32 %v450, %v450
      %v467 = vadd.f32 %v451, %v452
      %v468 = vadd.f32 %v467, %v453
      %v469 = vadd.f32 %v468, %v454
      %v470 = vadd.f32 %v469, %v455
      %v471 = vadd.f32 %v470, %v456
      %v472 = vadd.f32 %v471, %v457
      %v473 = vadd.f32 %v472, %v458
      %v474 = vadd.f32 %v473, %v459
      %v475 = vadd.f32 %v474, %v460
      %v476 = vadd.f32 %v475, %v461
      %v477 = vadd.f32 %v476, %v462
      %v478 = vadd.f32 %v477, %v463
      %v479 = vadd.f32 %v478, %v464
      %v480 = vadd.f32 %v479, %v465
      %v481 = vadd.f32 %v480, %v466
      %v482 = vrot.slane %v481, 4
      %v483 = vadd.f32 %v481, %v482
      %v484 = vrot.slane %v483, 2
      %v485 = vadd.f32 %v483, %v484
      %v486 = vrot.slane %v485, 1
      %v487 = vadd.f32 %v485, %v486
      %v488 = vmul.f32 %v487, 0.0078125
      %v489 = vld [vmem:[%s2] sm:$0x1]
      %v490 = vadd.f32 %v488, 1e-05
      %v491 = vrsqrt.pop %v490
      %v492 = vmul.f32 %v489, %v491
      %v493 = vld [vmem:[%s3] sm:$0x1]
      %v494 = vmul.f32 %v385, %v492
      %v495 = vsub.f32 %v493, %v494
      %v497 = vlaneseq
      %v498 = vshrl.u32 %v497, 7
      %v499 = vsub.s32 0, %v498
      %v500 = vrot.slane %v492, %v499
      %v502 = vmul.f32 %v348, %v500
      %v503 = vmul.f32 %v349, %v500
      %v504 = vmul.f32 %v350, %v500
      %v505 = vmul.f32 %v351, %v500
      %v506 = vmul.f32 %v352, %v500
      %v507 = vmul.f32 %v353, %v500
      %v508 = vmul.f32 %v354, %v500
      %v509 = vmul.f32 %v355, %v500
      %v510 = vmul.f32 %v356, %v500
      %v511 = vmul.f32 %v357, %v500
      %v512 = vmul.f32 %v358, %v500
      %v513 = vmul.f32 %v359, %v500
      %v514 = vmul.f32 %v360, %v500
      %v515 = vmul.f32 %v361, %v500
      %v516 = vmul.f32 %v362, %v500
      %v517 = vmul.f32 %v363, %v500
      %v519 = vlaneseq
      %v520 = vshrl.u32 %v519, 7
      %v521 = vsub.s32 0, %v520
      %v522 = vrot.slane %v495, %v521
      %v524 = vadd.f32 %v502, %v522
      %v525 = vadd.f32 %v503, %v522
      %v526 = vadd.f32 %v504, %v522
      %v527 = vadd.f32 %v505, %v522
      %v528 = vadd.f32 %v506, %v522
      %v529 = vadd.f32 %v507, %v522
      %v530 = vadd.f32 %v508, %v522
      %v531 = vadd.f32 %v509, %v522
      %v532 = vadd.f32 %v510, %v522
      %v533 = vadd.f32 %v511, %v522
      %v534 = vadd.f32 %v512, %v522
      %v535 = vadd.f32 %v513, %v522
      %v536 = vadd.f32 %v514, %v522
      %v537 = vadd.f32 %v515, %v522
      %v538 = vadd.f32 %v516, %v522
      %v539 = vadd.f32 %v517, %v522
      %vm540 = vcmp.ge.f32.partialorder %v524, 0.0
      %vm541 = vcmp.ge.f32.partialorder %v525, 0.0
      %vm542 = vcmp.ge.f32.partialorder %v526, 0.0
      %vm543 = vcmp.ge.f32.partialorder %v527, 0.0
      %vm544 = vcmp.ge.f32.partialorder %v528, 0.0
      %vm545 = vcmp.ge.f32.partialorder %v529, 0.0
      %vm546 = vcmp.ge.f32.partialorder %v530, 0.0
      %vm547 = vcmp.ge.f32.partialorder %v531, 0.0
      %vm548 = vcmp.ge.f32.partialorder %v532, 0.0
      %vm549 = vcmp.ge.f32.partialorder %v533, 0.0
      %vm550 = vcmp.ge.f32.partialorder %v534, 0.0
      %vm551 = vcmp.ge.f32.partialorder %v535, 0.0
      %vm552 = vcmp.ge.f32.partialorder %v536, 0.0
      %vm553 = vcmp.ge.f32.partialorder %v537, 0.0
      %vm554 = vcmp.ge.f32.partialorder %v538, 0.0
      %vm555 = vcmp.ge.f32.partialorder %v539, 0.0
      %v556 = vmul.f32 %v524, 0.2
      %v557 = vmul.f32 %v525, 0.2
      %v558 = vmul.f32 %v526, 0.2
      %v559 = vmul.f32 %v527, 0.2
      %v560 = vmul.f32 %v528, 0.2
      %v561 = vmul.f32 %v529, 0.2
      %v562 = vmul.f32 %v530, 0.2
      %v563 = vmul.f32 %v531, 0.2
      %v564 = vmul.f32 %v532, 0.2
      %v565 = vmul.f32 %v533, 0.2
      %v566 = vmul.f32 %v534, 0.2
      %v567 = vmul.f32 %v535, 0.2
      %v568 = vmul.f32 %v536, 0.2
      %v569 = vmul.f32 %v537, 0.2
      %v570 = vmul.f32 %v538, 0.2
      %v571 = vmul.f32 %v539, 0.2
      %v572 = vsel %vm540, %v524, %v556
      %v573 = vsel %vm541, %v525, %v557
      %v574 = vsel %vm542, %v526, %v558
      %v575 = vsel %vm543, %v527, %v559
      %v576 = vsel %vm544, %v528, %v560
      %v577 = vsel %vm545, %v529, %v561
      %v578 = vsel %vm546, %v530, %v562
      %v579 = vsel %vm547, %v531, %v563
      %v580 = vsel %vm548, %v532, %v564
      %v581 = vsel %vm549, %v533, %v565
      %v582 = vsel %vm550, %v534, %v566
      %v583 = vsel %vm551, %v535, %v567
      %v584 = vsel %vm552, %v536, %v568
      %v585 = vsel %vm553, %v537, %v569
      %v586 = vsel %vm554, %v538, %v570
      %v587 = vsel %vm555, %v539, %v571
      %588 = vst [vmem:[#allocation7] sm:$0xff] %v572
      %589 = vst [vmem:[#allocation7 + $0x8] sm:$0xff] %v573
      %590 = vst [vmem:[#allocation7 + $0x10] sm:$0xff] %v574
      %591 = vst [vmem:[#allocation7 + $0x18] sm:$0xff] %v575
      %592 = vst [vmem:[#allocation7 + $0x20] sm:$0xff] %v576
      %593 = vst [vmem:[#allocation7 + $0x28] sm:$0xff] %v577
      %594 = vst [vmem:[#allocation7 + $0x30] sm:$0xff] %v578
      %595 = vst [vmem:[#allocation7 + $0x38] sm:$0xff] %v579
      %596 = vst [vmem:[#allocation7 + $0x40] sm:$0xff] %v580
      %597 = vst [vmem:[#allocation7 + $0x48] sm:$0xff] %v581
      %598 = vst [vmem:[#allocation7 + $0x50] sm:$0xff] %v582
      %599 = vst [vmem:[#allocation7 + $0x58] sm:$0xff] %v583
      %600 = vst [vmem:[#allocation7 + $0x60] sm:$0xff] %v584
      %601 = vst [vmem:[#allocation7 + $0x68] sm:$0xff] %v585
      %602 = vst [vmem:[#allocation7 + $0x70] sm:$0xff] %v586
      %603 = vst [vmem:[#allocation7 + $0x78] sm:$0xff] %v587
    $region33: #{tpu_custom_call.1} parent=1 // pred_fallthru
      _
    // Predicated region
    $region34: #{tpu_custom_call.1} parent=1 // pred_check
      _
    $region35: #{tpu_custom_call.1} parent=1 // pred_check_branch
      %605 = sbr.rel (0) target = $region37
    $region36: #{tpu_custom_call.1} parent=1 // pred_region
      %s607 = ssub.s32 2048, 2048
      %608 = vsyncadd [#allocation4], %s607
      %s609 = sshll.u32 [#allocation7], 4
      %s610 = int_to_ptr.vmem [resolvable:$true] %s609
      %615 = dma.vmem_to_hbm [thread:$0]  %s610, 2048, %s4, [#allocation4], 128, 128, 8
    $region37: #{tpu_custom_call.1} parent=1 // pred_fallthru
      _
    // Predicated region
    $region38: #{tpu_custom_call.1} parent=1 // pred_check
      _
    $region39: #{tpu_custom_call.1} parent=1 // pred_check_branch
      %617 = sbr.rel (0) target = $region41
    $region40: #{tpu_custom_call.1} parent=1 // pred_region
      %618 = dma.done [#allocation4], 2048
    $region41: #{tpu_custom_call.1} parent=1 // pred_fallthru
      _
    %619 = vsyncpa [#allocation3], 1
    %620 = vsyncpa [#allocation6], 1
    %621 = vsyncpa [#allocation4], 1

</llo_original>
